<compile_context>
chip_gen: v6e
topology: v6e:2x2x1
jax: 0.10.0
libtpu: 0.0.40
codegen_flags: <defaults>
</compile_context>

<pallas_src>
import functools

import jax
import jax.numpy as jnp
from jax.experimental import pallas as pl
from jax.experimental.pallas import tpu as pltpu

_LANES = 128     # lane width of the packed/output block -> dense stores
_MAX_TB = 8192   # row-tile cap for VMEM safety on huge batched rollouts


def _controller_kernel(k_pad, zh_ref, wb_ref, o_ref):
    """tanh(zh @ W^T + b) on one row tile.

    wb_ref is the packed parameter block [k_pad + 8, 128]:
      rows [0, k_pad) : W^T (zero-padded rows/cols), row k_pad : bias.
    Static, 8-aligned slices -> free views (no sublane repack copies).
    """
    w = wb_ref[:k_pad, :]                  # [k_pad, 128]
    bias = wb_ref[k_pad:k_pad + 1, :]      # [1, 128]
    acc = jnp.dot(zh_ref[...], w, preferred_element_type=jnp.float32)  # MXU
    o_ref[...] = jnp.tanh(acc + bias)      # VPU add + EUP tanh, dense store


def pack_params(w, b, n_lanes=_LANES):
    """One-time parameter packing (hoisted out of the per-step path).

    w: [n_action, dz+dh] (PyTorch nn.Linear layout), b: [n_action]
    -> wb: [k_pad + 8, n_lanes] fp32 with W^T in rows [0, dz+dh) and the bias
    in row k_pad; all other entries zero (padded output lanes stay tanh(0)=0
    and every in-kernel slice lands on a sublane-aligned offset).
    """
    w = jnp.asarray(w, jnp.float32)
    b = jnp.asarray(b, jnp.float32)
    n_action, k = w.shape
    assert n_action <= n_lanes
    k_pad = 8 * pl.cdiv(k, 8)
    wb = jnp.zeros((k_pad + 8, n_lanes), jnp.float32)
    wb = wb.at[:k, :n_action].set(w.T)
    wb = wb.at[k_pad, :n_action].set(b)
    return wb


def _num_tensorcores():
    """Best-effort TensorCore count (1 on v5e/v6e, 2 on v7x)."""
    try:
        info = pltpu.get_tpu_info()
        for attr in ("num_cores", "num_tensorcores", "core_count",
                     "tensorcore_count", "cores_per_chip"):
            n = getattr(info, attr, None)
            if isinstance(n, int) and n > 0:
                return n
    except Exception:
        pass
    try:
        n = getattr(jax.devices()[0], "num_cores", None)
        if isinstance(n, int) and n > 0:
            return n
    except Exception:
        pass
    return 1


def _pick_tile(B, num_cores):
    """Row tile / grid length.

    Single-TC: one full-array block (grid steps are a serial loop; each extra
    step is pure overhead here).  Multi-TC (v7x): exactly num_cores equal,
    8-aligned blocks so each core runs one step.  Tile capped at _MAX_TB rows.
    """
    if num_cores > 1 and B % (8 * num_cores) == 0 and B >= 8 * num_cores:
        target = num_cores
    else:
        target = 1
    target = max(target, pl.cdiv(B, _MAX_TB))
    if target == 1:
        return B, 1
    if B % 8 != 0:
        # TODO(synk): unaligned huge batches fall back to one big block.
        return B, 1
    tb = 8 * pl.cdiv(B, 8 * target)
    return tb, pl.cdiv(B, tb)


def controller_forward_zh(zh, wb, *, n_action=3, num_cores=None):
    """zh: [B, dz+dh] contiguous, wb: packed params from pack_params()."""
    B, K = zh.shape
    n_lanes = wb.shape[1]
    k_pad = wb.shape[0] - 8
    assert k_pad == 8 * pl.cdiv(K, 8) and n_action <= n_lanes

    if K != k_pad:  # keep the contraction dim sublane-aligned (pad cols of W are 0)
        zh = jnp.pad(zh, ((0, 0), (0, k_pad - K)))

    if num_cores is None:
        num_cores = _num_tensorcores()
    tb, grid = _pick_tile(B, num_cores)

    out = pl.pallas_call(
        functools.partial(_controller_kernel, k_pad),
        out_shape=jax.ShapeDtypeStruct((B, n_lanes), jnp.float32),
        grid=(grid,),
        in_specs=[
            pl.BlockSpec((tb, k_pad), lambda i: (i, 0)),
            pl.BlockSpec((k_pad + 8, n_lanes), lambda i: (0, 0)),
        ],
        out_specs=pl.BlockSpec((tb, n_lanes), lambda i: (i, 0)),
        compiler_params=pltpu.CompilerParams(
            dimension_semantics=("parallel",)),
    )(zh, wb)
    # Kernel stores a lane-dense (tb, 128) block; narrow to n_action here.
    return out[:, :n_action]


def controller_forward(z, h, wb, *, n_action=3, num_cores=None):
    """z: [B, dz], h: [B, dh].  Concat hoisted out of the kernel (one XLA op);
    prefer having the rollout/MDN-RNN wrapper emit z,h adjacent already."""
    zh = jnp.concatenate([z, h], axis=1)
    return controller_forward_zh(zh, wb, n_action=n_action, num_cores=num_cores)


if __name__ == "__main__":
    # Deterministic synthetic parameters / inputs (no checkpoint load).
    B, dz, dh, n_action = 4, 32, 64, 3
    key = jax.random.PRNGKey(0)
    kz, kh, kw, kb = jax.random.split(key, 4)

    z = jax.random.normal(kz, (B, dz), dtype=jnp.float32)
    h = jax.random.normal(kh, (B, dh), dtype=jnp.float32)

    # nn.Linear(dz+dh, 3) default init: U(-1/sqrt(fan_in), 1/sqrt(fan_in))
    fan_in = dz + dh
    bound = 1.0 / float(fan_in) ** 0.5
    w = jax.random.uniform(kw, (n_action, fan_in), dtype=jnp.float32,
                           minval=-bound, maxval=bound)
    b = jax.random.uniform(kb, (n_action,), dtype=jnp.float32,
                           minval=-bound, maxval=bound)

    # Parameter packing happens ONCE at init, not per forward step.
    wb = pack_params(w, b)

    def ref_fn(zz, hh):
        return jnp.tanh(jnp.concatenate([zz, hh], axis=1) @ w.T + b)

    # 1) Per-step path: single invocation, full-array block.
    out = controller_forward(z, h, wb)
    jax.block_until_ready(out)
    assert out.shape == (B, n_action)
    assert jnp.allclose(out, ref_fn(z, h), atol=1e-5, rtol=1e-5)

    # 2) Batched rollout, forced 2-way split (v7x-style megacore): exactly
    #    two equal 8-aligned blocks, one per TensorCore.
    Bb = 512
    kz2, kh2 = jax.random.split(jax.random.PRNGKey(1), 2)
    z2 = jax.random.normal(kz2, (Bb, dz), dtype=jnp.float32)
    h2 = jax.random.normal(kh2, (Bb, dh), dtype=jnp.float32)
    out2 = controller_forward(z2, h2, wb, num_cores=2)
    jax.block_until_ready(out2)
    assert out2.shape == (Bb, n_action)
    assert jnp.allclose(out2, ref_fn(z2, h2), atol=1e-5, rtol=1e-5)

    # 3) Batched rollout at a size that previously exploded into 33 grid
    #    steps (B=264, not a multiple of 256) -- now a single block on
    #    single-TC parts (hardware-detected core count).
    Bc = 264
    kz3, kh3 = jax.random.split(jax.random.PRNGKey(2), 2)
    z3 = jax.random.normal(kz3, (Bc, dz), dtype=jnp.float32)
    h3 = jax.random.normal(kh3, (Bc, dh), dtype=jnp.float32)
    out3 = controller_forward(z3, h3, wb)
    jax.block_until_ready(out3)
    assert out3.shape == (Bc, n_action)
    assert jnp.allclose(out3, ref_fn(z3, h3), atol=1e-5, rtol=1e-5)

    print("KERNEL_OK")
</pallas_src>

<mosaic_0001>
module attributes {stable_mosaic.version = 11 : i64} {
  func.func @_controller_kernel(%arg0: i32, %arg1: memref<4x96xf32, #tpu.memory_space<vmem>>, %arg2: memref<104x128xf32, #tpu.memory_space<vmem>>, %arg3: memref<4x128xf32, #tpu.memory_space<vmem>>) attributes {dimension_semantics = [#tpu.dimension_semantics<parallel>], iteration_bounds = array<i64: 1>, scalar_prefetch = 0 : i64, scratch_operands = 0 : i64, tpu.core_type = #tpu.core_type<tc>, window_params = [{transform_indices = @transform_0, window_bounds = array<i64: 4, 96>}, {pipeline_mode = #tpu.pipeline_mode<synchronous>, transform_indices = @transform_1, window_bounds = array<i64: 104, 128>}, {transform_indices = @transform_2, window_bounds = array<i64: 4, 128>}]} {
    %c0 = arith.constant 0 : index
    %c0_0 = arith.constant 0 : index
    %0 = vector.load %arg2[%c0, %c0_0] : memref<104x128xf32, #tpu.memory_space<vmem>>, vector<96x128xf32>
    %c96 = arith.constant 96 : index
    %c0_1 = arith.constant 0 : index
    %1 = vector.load %arg2[%c96, %c0_1] : memref<104x128xf32, #tpu.memory_space<vmem>>, vector<1x128xf32>
    %c0_2 = arith.constant 0 : index
    %c0_3 = arith.constant 0 : index
    %2 = vector.load %arg1[%c0_2, %c0_3] : memref<4x96xf32, #tpu.memory_space<vmem>>, vector<4x96xf32>
    %cst = arith.constant dense<0.000000e+00> : vector<4x128xf32>
    %3 = tpu.matmul %2, %0, %cst {dimension_numbers = #tpu.dot_dimension_numbers<[1], [0], [0], [1], [0, 0, 1, 1], [], []>} : vector<4x96xf32>, vector<96x128xf32>, vector<4x128xf32> -> vector<4x128xf32>
    %4 = vector.broadcast %1 : vector<1x128xf32> to vector<4x128xf32>
    %5 = arith.addf %3, %4 : vector<4x128xf32>
    %6 = math.tanh %5 : vector<4x128xf32>
    %c0_4 = arith.constant 0 : index
    %c0_5 = arith.constant 0 : index
    %7 = vector.load %arg3[%c0_4, %c0_5] : memref<4x128xf32, #tpu.memory_space<vmem>>, vector<4x128xf32>
    tpu.vector_store %arg3[%c0_4, %c0_5], %6 {strides = array<i32>} : memref<4x128xf32, #tpu.memory_space<vmem>>, vector<4x128xf32>,
    return
  }
  func.func @transform_0(%arg0: i32) -> (i32, i32) {
    %c0_i32 = arith.constant 0 : i32
    %c0_i32_0 = arith.constant 0 : i32
    return %arg0, %c0_i32 : i32, i32
  }
  func.func @transform_1(%arg0: i32) -> (i32, i32) {
    %c0_i32 = arith.constant 0 : i32
    %c0_i32_0 = arith.constant 0 : i32
    %c0_i32_1 = arith.constant 0 : i32
    return %c0_i32, %c0_i32_0 : i32, i32
  }
  func.func @transform_2(%arg0: i32) -> (i32, i32) {
    %c0_i32 = arith.constant 0 : i32
    %c0_i32_0 = arith.constant 0 : i32
    return %arg0, %c0_i32 : i32, i32
  }
}

</mosaic_0001>

<llo_original>
// kernel: tpu_custom_call.1
$region0: #{tpu_custom_call.1}
  #allocation0 [shape = 'u32[]', space=smem, size = 0x4, offset = 0x4, fixed_abs, tag = 'smem constant byte address 0x4 - core index']
  #allocation1 [shape = 'u32[144,128]{1,0:T(1,128)}', space=vmem, size = 0x12000, scoped, tag = 'internal scratch']
  %s0 = inlined_call_operand.hbm [shape: f32[4,96], index: 0, kind: input, shape index: {}]
  %s1 = inlined_call_operand.hbm [shape: f32[104,128], index: 1, kind: input, shape index: {}]
  %s2 = inlined_call_operand.hbm [shape: f32[4,128], index: 2, kind: output, shape index: {}]
  %s3 = sld [smem:[#allocation0]]
  $region26: #{tpu_custom_call.1} parent=0
    _
  %s5 = ssub.s32 1, %s3
  %s6 = scalar_select 0, %s5, %s3
  $region1: #{tpu_custom_call.1} parent=0
    #allocation2 [shape = 'u8[2048]{0}', space=vmem, size = 0x800, scoped, tag = 'input window, operand 0, single buffered']
    #allocation3 [shape = 's32[1]{0}', space=sflag, size = 0x4, scoped, tag = 'scoped memory for tpu_custom_call.1']
    #allocation4 [shape = 's32[1]{0}', space=sflag, size = 0x4, scoped, tag = 'scoped memory for tpu_custom_call.1']
    #allocation5 [shape = 'u8[53248]{0}', space=vmem, size = 0xd000, scoped, tag = 'input window, operand 1, single buffered']
    #allocation6 [shape = 's32[1]{0}', space=sflag, size = 0x4, scoped, tag = 'scoped memory for tpu_custom_call.1']
    #allocation7 [shape = 'u8[2048]{0}', space=vmem, size = 0x800, scoped, tag = 'output window, operand 0, single buffered']
    %7 = vsyncpa [#allocation3], 0
    %8 = vsyncpa [#allocation6], 0
    %9 = vsyncpa [#allocation4], 0
    // Predicated region
    $region2: #{tpu_custom_call.1} parent=1 // pred_check
      _
    $region3: #{tpu_custom_call.1} parent=1 // pred_check_branch
      %11 = sbr.rel (0) target = $region5
    $region4: #{tpu_custom_call.1} parent=1 // pred_region
      %s13 = ssub.s32 64, 64
      %14 = vsyncadd [#allocation3], %s13
      %s16 = sshll.u32 [#allocation2], 4
      %s17 = int_to_ptr.vmem [resolvable:$true] %s16
      %19 = dma.hbm_to_vmem [thread:$0]  %s0, 64, %s17, [#allocation3]
    $region5: #{tpu_custom_call.1} parent=1 // pred_fallthru
      _
    // Predicated region
    $region6: #{tpu_custom_call.1} parent=1 // pred_check
      _
    $region7: #{tpu_custom_call.1} parent=1 // pred_check_branch
      %21 = sbr.rel (0) target = $region9
    $region8: #{tpu_custom_call.1} parent=1 // pred_region
      %s23 = ssub.s32 1664, 1664
      %24 = vsyncadd [#allocation6], %s23
      %s25 = sshll.u32 [#allocation5], 4
      %s26 = int_to_ptr.vmem [resolvable:$true] %s25
      %31 = dma.hbm_to_vmem [thread:$0]  %s1, 1664, %s26, [#allocation6], 128, 128, 8
    $region9: #{tpu_custom_call.1} parent=1 // pred_fallthru
      _
    // Predicated region
    $region10: #{tpu_custom_call.1} parent=1 // pred_check
      _
    $region11: #{tpu_custom_call.1} parent=1 // pred_check_branch
      %33 = sbr.rel (0) target = $region13
    $region12: #{tpu_custom_call.1} parent=1 // pred_region
      %34 = dma.done [#allocation3], 64
    $region13: #{tpu_custom_call.1} parent=1 // pred_fallthru
      _
    // Predicated region
    $region14: #{tpu_custom_call.1} parent=1 // pred_check
      _
    $region15: #{tpu_custom_call.1} parent=1 // pred_check_branch
      %36 = sbr.rel (0) target = $region17
    $region16: #{tpu_custom_call.1} parent=1 // pred_region
      %37 = dma.done [#allocation6], 1664
    $region17: #{tpu_custom_call.1} parent=1 // pred_fallthru
      _
    %v38 = vld [vmem:[#allocation5] sm:$0xff]
    %v39 = vld [vmem:[#allocation5 + $0x8] sm:$0xff]
    %v40 = vld [vmem:[#allocation5 + $0x10] sm:$0xff]
    %v41 = vld [vmem:[#allocation5 + $0x18] sm:$0xff]
    %v42 = vld [vmem:[#allocation5 + $0x20] sm:$0xff]
    %v43 = vld [vmem:[#allocation5 + $0x28] sm:$0xff]
    %v44 = vld [vmem:[#allocation5 + $0x30] sm:$0xff]
    %v45 = vld [vmem:[#allocation5 + $0x38] sm:$0xff]
    %v46 = vld [vmem:[#allocation5 + $0x40] sm:$0xff]
    %v47 = vld [vmem:[#allocation5 + $0x48] sm:$0xff]
    %v48 = vld [vmem:[#allocation5 + $0x50] sm:$0xff]
    %v49 = vld [vmem:[#allocation5 + $0x58] sm:$0xff]
    %v50 = vld [vmem:[#allocation5 + $0x60] sm:$0x1]
    %v51 = vld [vmem:[#allocation2] sm:$0xf]
    %v52 = vlaneseq
    %v53 = vshrl.u32 %v52, 7
    %v54 = vsub.s32 0, %v53
    %v55 = vrot.slane %v50, %v54
    %vm56 = vcmask 785408
    %v58 = vsel %vm56, %v51, 0
    %60 = vmatprep.subr.mxu0 0.0
    %61 = vmatpush1.msra.mxu0 0.0
    %62 = vmatprep.subr.mxu0 0.0
    %63 = vmatpush1.msra.mxu0 0.0
    %64 = vmatprep.subr.mxu0 0.0
    %65 = vmatpush1.msra.mxu0 0.0
    %66 = vmatprep.subr.mxu0 0.0
    %67 = vmatpush1.msra.mxu0 0.0
    %68 = vmatprep.subr.mxu0 0.0
    %69 = vmatpush1.msra.mxu0 %v49
    %70 = vmatprep.subr.mxu0 0.0
    %71 = vmatpush1.msra.mxu0 %v48
    %72 = vmatprep.subr.mxu0 0.0
    %73 = vmatpush1.msra.mxu0 %v47
    %74 = vmatprep.subr.mxu0 0.0
    %75 = vmatpush1.msra.mxu0 %v46
    %76 = vmatprep.subr.mxu0 0.0
    %77 = vmatpush1.msra.mxu0 %v45
    %78 = vmatprep.subr.mxu0 0.0
    %79 = vmatpush1.msra.mxu0 %v44
    %80 = vmatprep.subr.mxu0 0.0
    %81 = vmatpush1.msra.mxu0 %v43
    %82 = vmatprep.subr.mxu0 0.0
    %83 = vmatpush1.msra.mxu0 %v42
    %84 = vmatprep.subr.mxu0 0.0
    %85 = vmatpush1.msra.mxu0 %v41
    %86 = vmatprep.subr.mxu0 0.0
    %87 = vmatpush1.msra.mxu0 %v40
    %88 = vmatprep.subr.mxu0 0.0
    %89 = vmatpush1.msra.mxu0 %v39
    %90 = vmatprep.subr.mxu0 0.0
    %91 = vmatpush1.msra.mxu0 %v38
    %92 = vmatprep.subr.mxu0 0.0
    %93 = vmatpush2.msra.mxu0 0.0
    %94 = vmatprep.subr.mxu0 0.0
    %95 = vmatpush2.msra.mxu0 0.0
    %96 = vmatprep.subr.mxu0 0.0
    %97 = vmatpush2.msra.mxu0 0.0
    %98 = vmatprep.subr.mxu0 0.0
    %99 = vmatpush2.msra.mxu0 0.0
    %100 = vmatprep.subr.mxu0 0.0
    %101 = vmatpush2.msra.mxu0 0.0
    %102 = vmatprep.subr.mxu0 0.0
    %103 = vmatpush2.msra.mxu0 0.0
    %104 = vmatprep.subr.mxu0 0.0
    %105 = vmatpush2.msra.mxu0 0.0
    %106 = vmatprep.subr.mxu0 0.0
    %107 = vmatpush2.msra.mxu0 0.0
    %108 = vmatprep.subr.mxu0 0.0
    %109 = vmatpush2.msra.mxu0 0.0
    %110 = vmatprep.subr.mxu0 0.0
    %111 = vmatpush2.msra.mxu0 0.0
    %112 = vmatprep.subr.mxu0 0.0
    %113 = vmatpush2.msra.mxu0 0.0
    %114 = vmatprep.subr.mxu0 0.0
    %115 = vmatpush2.msra.mxu0 0.0
    %116 = vmatprep.subr.mxu0 0.0
    %117 = vmatpush2.msra.mxu0 0.0
    %118 = vmatprep.subr.mxu0 0.0
    %119 = vmatpush2.msra.mxu0 0.0
    %120 = vmatprep.subr.mxu0 0.0
    %121 = vmatpush2.msra.mxu0 0.0
    %122 = vmatprep.subr.mxu0 0.0
    %123 = vmatpush2.msra.mxu0 0.0
    %124 = vmatprep.mubr.f32.mxu0 0.0
    %125 = vmatmul.mubr.f32.gmra.mxu0 %v58
    %v126 = vpop.f32.mrf.mxu0
    %v127 = vadd.f32 %v55, %v126
    %v128 = vpop.f32.mrf.mxu0
    %129 = vdwg.mxu0
    %v130 = vtanh.pop %v127
    %131 = vst [vmem:[#allocation7] sm:$0xf] %v130
    // Predicated region
    $region18: #{tpu_custom_call.1} parent=1 // pred_check
      _
    $region19: #{tpu_custom_call.1} parent=1 // pred_check_branch
      %133 = sbr.rel (0) target = $region21
    $region20: #{tpu_custom_call.1} parent=1 // pred_region
      %s135 = ssub.s32 64, 64
      %136 = vsyncadd [#allocation4], %s135
      %s138 = sshll.u32 [#allocation7], 4
      %s139 = int_to_ptr.vmem [resolvable:$true] %s138
      %141 = dma.vmem_to_hbm [thread:$0]  %s139, 64, %s2, [#allocation4]
    $region21: #{tpu_custom_call.1} parent=1 // pred_fallthru
      _
    // Predicated region
    $region22: #{tpu_custom_call.1} parent=1 // pred_check
      _
    $region23: #{tpu_custom_call.1} parent=1 // pred_check_branch
      %143 = sbr.rel (0) target = $region25
    $region24: #{tpu_custom_call.1} parent=1 // pred_region
      %144 = dma.done [#allocation4], 64
    $region25: #{tpu_custom_call.1} parent=1 // pred_fallthru
      _
    %145 = vsyncpa [#allocation3], 1
    %146 = vsyncpa [#allocation6], 1
    %147 = vsyncpa [#allocation4], 1

</llo_original>
